<compile_context>
chip_gen: v7x
topology: tpu7x:2x2x1
jax: 0.10.0
libtpu: 0.0.40
codegen_flags: <defaults>
</compile_context>

<pallas_src>
import functools

import jax
import jax.numpy as jnp
from jax import lax
from jax.experimental import pallas as pl
from jax.experimental.pallas import tpu as pltpu

ACT_DTYPE = jnp.bfloat16   # activation / MXU-operand storage dtype
TM = 256                   # M tile (rows of the patch matrix)
TN = 256                   # Cout tile
TK = 1152                  # K tile (9*128 -> exact tiling for the 3x3 convs)


def _cdiv(a, b):
    return -(-a // b)


def _round_up(a, b):
    return _cdiv(a, b) * b


_VMEM_LIMIT = None


def _vmem_limit():
    """Per-chip VMEM cap (75% of capacity, never above 96 MiB)."""
    global _VMEM_LIMIT
    if _VMEM_LIMIT is None:
        try:
            cap = int(pltpu.get_tpu_info().vmem_capacity_bytes)
        except Exception:
            cap = 64 * 1024 * 1024   # conservative (v7x) fallback
        _VMEM_LIMIT = min(cap, 128 * 1024 * 1024) * 3 // 4
    return _VMEM_LIMIT


# ---------------------------------------------------------------------------
# Pallas kernels: fused matmul + BN affine [+ residual] [+ ReLU]
# ---------------------------------------------------------------------------
def _mm_bn_kernel(a_ref, w_ref, s_ref, b_ref, o_ref, acc_ref, *, relu):
    """K-accumulated: out = [relu]((A @ W) * scale + bias)."""
    k = pl.program_id(2)

    @pl.when(k == 0)
    def _():
        acc_ref[...] = jnp.zeros_like(acc_ref)

    acc_ref[...] += jnp.dot(a_ref[...], w_ref[...],
                            preferred_element_type=jnp.float32)

    @pl.when(k == pl.num_programs(2) - 1)
    def _():
        y = acc_ref[...] * s_ref[...] + b_ref[...]
        if relu:
            y = jnp.maximum(y, 0.0)
        o_ref[...] = y.astype(o_ref.dtype)


def _mm_bn_res_kernel(a_ref, w_ref, s_ref, b_ref, r_ref, o_ref, acc_ref, *, relu):
    """K-accumulated: out = [relu]((A @ W) * scale + bias + residual)."""
    k = pl.program_id(2)

    @pl.when(k == 0)
    def _():
        acc_ref[...] = jnp.zeros_like(acc_ref)

    acc_ref[...] += jnp.dot(a_ref[...], w_ref[...],
                            preferred_element_type=jnp.float32)

    @pl.when(k == pl.num_programs(2) - 1)
    def _():
        y = acc_ref[...] * s_ref[...] + b_ref[...] + r_ref[...].astype(jnp.float32)
        if relu:
            y = jnp.maximum(y, 0.0)
        o_ref[...] = y.astype(o_ref.dtype)


def _mm_bn_kernel_1k(a_ref, w_ref, s_ref, b_ref, o_ref, *, relu):
    """Single K tile: no accumulator scratch, no K branches."""
    y = jnp.dot(a_ref[...], w_ref[...], preferred_element_type=jnp.float32)
    y = y * s_ref[...] + b_ref[...]
    if relu:
        y = jnp.maximum(y, 0.0)
    o_ref[...] = y.astype(o_ref.dtype)


def _mm_bn_res_kernel_1k(a_ref, w_ref, s_ref, b_ref, r_ref, o_ref, *, relu):
    y = jnp.dot(a_ref[...], w_ref[...], preferred_element_type=jnp.float32)
    y = y * s_ref[...] + b_ref[...] + r_ref[...].astype(jnp.float32)
    if relu:
        y = jnp.maximum(y, 0.0)
    o_ref[...] = y.astype(o_ref.dtype)


def _avgpool_kernel(x_ref, o_ref, acc_ref, *, inv_hw):
    """x block (1, tr, C) -> running f32 sum -> mean (AdaptiveAvgPool2d(1))."""
    r = pl.program_id(1)

    @pl.when(r == 0)
    def _():
        acc_ref[...] = jnp.zeros_like(acc_ref)

    acc_ref[...] += jnp.sum(x_ref[...].astype(jnp.float32), axis=1, keepdims=True)

    @pl.when(r == pl.num_programs(1) - 1)
    def _():
        o_ref[...] = (acc_ref[...] * inv_hw).astype(o_ref.dtype)


# ---------------------------------------------------------------------------
# Pallas wrappers
# ---------------------------------------------------------------------------
def matmul_affine(a, w, scale, bias, relu, residual=None):
    """(M,K) @ (K,Cout) * scale + bias [+ residual] [+ relu].

    bf16 operands, f32 accumulation, (M, Cout, K) tiled grid with K innermost.
    """
    m, k = a.shape
    kw_, cout = w.shape
    assert k == kw_
    a = a.astype(ACT_DTYPE)
    w = w.astype(ACT_DTYPE)

    # ---- tile sizes: bounded VMEM footprint independent of problem size ----
    tm = min(TM, _round_up(m, 8))
    nm = _cdiv(m, tm)
    tm = _round_up(_cdiv(m, nm), 8)
    mp = tm * nm

    tn = min(TN, cout)          # lane-dense whenever cout >= 128; tn==cout below
    nn = _cdiv(cout, tn)
    np_ = tn * nn

    tk = min(TK, _round_up(k, 128))
    nk = _cdiv(k, tk)
    tk = _round_up(_cdiv(k, nk), 128)
    kp = tk * nk

    # ---- zero-pad to tile multiples (zeros contribute nothing) ----
    if (mp, kp) != (m, k):
        a = jnp.pad(a, ((0, mp - m), (0, kp - k)))
    if (kp, np_) != (k, cout):
        w = jnp.pad(w, ((0, kp - k), (0, np_ - cout)))
    s2 = scale.reshape(1, cout).astype(jnp.float32)
    b2 = bias.reshape(1, cout).astype(jnp.float32)
    if np_ != cout:
        s2 = jnp.pad(s2, ((0, 0), (0, np_ - cout)))
        b2 = jnp.pad(b2, ((0, 0), (0, np_ - cout)))

    inputs = [a, w, s2, b2]
    if residual is not None:
        r = residual.reshape(m, cout).astype(ACT_DTYPE)
        if (mp, np_) != (m, cout):
            r = jnp.pad(r, ((0, mp - m), (0, np_ - cout)))
        inputs.append(r)

    if nk == 1:
        grid = (nm, nn)
        in_specs = [
            pl.BlockSpec((tm, tk), lambda i, j: (i, 0)),
            pl.BlockSpec((tk, tn), lambda i, j: (0, j)),
            pl.BlockSpec((1, tn), lambda i, j: (0, j)),
            pl.BlockSpec((1, tn), lambda i, j: (0, j)),
        ]
        if residual is not None:
            in_specs.append(pl.BlockSpec((tm, tn), lambda i, j: (i, j)))
        out_specs = pl.BlockSpec((tm, tn), lambda i, j: (i, j))
        scratch = []
        base = _mm_bn_res_kernel_1k if residual is not None else _mm_bn_kernel_1k
        dims = ("parallel", "parallel")
    else:
        grid = (nm, nn, nk)
        in_specs = [
            pl.BlockSpec((tm, tk), lambda i, j, kk: (i, kk)),
            pl.BlockSpec((tk, tn), lambda i, j, kk: (kk, j)),
            pl.BlockSpec((1, tn), lambda i, j, kk: (0, j)),
            pl.BlockSpec((1, tn), lambda i, j, kk: (0, j)),
        ]
        if residual is not None:
            in_specs.append(pl.BlockSpec((tm, tn), lambda i, j, kk: (i, j)))
        out_specs = pl.BlockSpec((tm, tn), lambda i, j, kk: (i, j))
        scratch = [pltpu.VMEM((tm, tn), jnp.float32)]
        base = _mm_bn_res_kernel if residual is not None else _mm_bn_kernel
        dims = ("parallel", "parallel", "arbitrary")

    out = pl.pallas_call(
        functools.partial(base, relu=relu),
        out_shape=jax.ShapeDtypeStruct((mp, np_), ACT_DTYPE),
        grid_spec=pltpu.PrefetchScalarGridSpec(
            num_scalar_prefetch=0,
            grid=grid,
            in_specs=in_specs,
            out_specs=out_specs,
            scratch_shapes=scratch,
        ),
        compiler_params=pltpu.CompilerParams(
            dimension_semantics=dims,
            vmem_limit_bytes=_vmem_limit(),
        ),
    )(*inputs)
    if (mp, np_) != (m, cout):
        out = out[:m, :cout]
    return out


def global_avg_pool(x):  # NHWC -> (N, C)   (AdaptiveAvgPool2d(1)), row-tiled
    n, h, w, c = x.shape
    hw = h * w
    x2 = x.reshape(n, hw, c)
    tr = min(512, _round_up(hw, 8))
    nr = _cdiv(hw, tr)
    hwp = tr * nr
    if hwp != hw:
        x2 = jnp.pad(x2, ((0, 0), (0, hwp - hw), (0, 0)))
    out = pl.pallas_call(
        functools.partial(_avgpool_kernel, inv_hw=1.0 / float(hw)),
        out_shape=jax.ShapeDtypeStruct((n, 1, c), x.dtype),
        grid_spec=pltpu.PrefetchScalarGridSpec(
            num_scalar_prefetch=0,
            grid=(n, nr),
            in_specs=[pl.BlockSpec((1, tr, c), lambda b, r: (b, r, 0))],
            out_specs=pl.BlockSpec((1, 1, c), lambda b, r: (b, 0, 0)),
            scratch_shapes=[pltpu.VMEM((1, 1, c), jnp.float32)],
        ),
        compiler_params=pltpu.CompilerParams(
            dimension_semantics=("parallel", "arbitrary"),
            vmem_limit_bytes=_vmem_limit(),
        ),
    )(x2)
    return out.reshape(n, c)


def conv2d_affine(x, w, scale, bias, stride=1, padding=0, dilation=1,
                  relu=True, residual=None):
    """Conv2d (no bias) folded with BN affine [+ residual add] [+ ReLU].

    x: NHWC, w: (KH,KW,Cin,Cout); residual (if given): NHWC matching the output.
    """
    n, h, wdt, cin = x.shape
    kh, kw, _, cout = w.shape
    x = x.astype(ACT_DTYPE)
    if kh == 1 and kw == 1 and padding == 0:
        xs = x[:, ::stride, ::stride, :] if stride != 1 else x
        _, ho, wo, _ = xs.shape
        patches = xs.reshape(n * ho * wo, cin)
    else:
        ho = (h + 2 * padding - dilation * (kh - 1) - 1) // stride + 1
        wo = (wdt + 2 * padding - dilation * (kw - 1) - 1) // stride + 1
        xp = jnp.pad(x, ((0, 0), (padding, padding), (padding, padding), (0, 0)))
        cols = []
        for i in range(kh):
            for j in range(kw):
                hs, ws = i * dilation, j * dilation
                cols.append(xp[:, hs:hs + stride * (ho - 1) + 1:stride,
                                  ws:ws + stride * (wo - 1) + 1:stride, :])
        # TODO(synk): stream these shifted windows from the padded activation
        # directly inside the Pallas kernel (manual DMA over taps) instead of
        # materializing the KH*KW-inflated patch matrix (built here in bf16 to
        # halve its HBM traffic vs f32).
        patches = jnp.concatenate(cols, axis=-1).reshape(n * ho * wo, kh * kw * cin)
    res2 = residual.reshape(n * ho * wo, cout) if residual is not None else None
    out = matmul_affine(patches, w.reshape(kh * kw * cin, cout),
                        scale, bias, relu, residual=res2)
    return out.reshape(n, ho, wo, cout)


# ---------------------------------------------------------------------------
# Plain-JAX glue (not the hot path)
# ---------------------------------------------------------------------------
def max_pool_3x3_s2_p1(x):  # nn.MaxPool2d(kernel_size=3, stride=2, padding=1), NHWC
    neg_inf = jnp.array(-jnp.inf, dtype=x.dtype)
    return lax.reduce_window(x, neg_inf, lax.max,
                             (1, 3, 3, 1), (1, 2, 2, 1),
                             ((0, 0), (1, 1), (1, 1), (0, 0)))


def _interp_matrix_align_corners(out_size, in_size):
    if in_size == 1:
        return jnp.ones((out_size, 1), jnp.float32)
    src = jnp.arange(out_size, dtype=jnp.float32) * (in_size - 1) / (out_size - 1)
    lo = jnp.clip(jnp.floor(src).astype(jnp.int32), 0, in_size - 2)
    frac = src - lo.astype(jnp.float32)
    idx = jnp.arange(out_size)
    m = jnp.zeros((out_size, in_size), jnp.float32)
    m = m.at[idx, lo].add(1.0 - frac)
    m = m.at[idx, lo + 1].add(frac)
    return m


def bilinear_upsample_align_corners(x, oh, ow):
    # glue: F.interpolate(mode='bilinear', align_corners=True) on the tiny logits map
    rh = _interp_matrix_align_corners(oh, x.shape[1])
    rw = _interp_matrix_align_corners(ow, x.shape[2])
    return jnp.einsum('ph,qw,nhwc->npqc', rh, rw, x.astype(jnp.float32))


# ---------------------------------------------------------------------------
# Deterministic parameter construction
# ---------------------------------------------------------------------------
class ParamGen:
    def __init__(self, seed):
        self._key = jax.random.PRNGKey(seed)

    def next_key(self):
        self._key, sub = jax.random.split(self._key)
        return sub

    def conv_weight(self, kh, kw, cin, cout):
        fan_in = kh * kw * cin
        w = (jax.random.normal(self.next_key(), (kh, kw, cin, cout), jnp.float32)
             * (0.5 * (2.0 / fan_in) ** 0.5))
        return w.astype(ACT_DTYPE)   # stored bf16 (MXU-native)

    def bn_affine(self, c, eps=1e-5):
        # Fresh nn.BatchNorm2d (eval): gamma=1, beta=0, running_mean=0, running_var=1
        scale = jnp.full((c,), 1.0 / float(jnp.sqrt(1.0 + eps)), jnp.float32)
        bias = jnp.zeros((c,), jnp.float32)
        return scale, bias


def make_cbr(pg, cin, cout, k, stride, padding, dilation, relu=True):
    scale, bias = pg.bn_affine(cout)
    return dict(w=pg.conv_weight(k, k, cin, cout), scale=scale, bias=bias,
                stride=stride, padding=padding, dilation=dilation, relu=relu)


def apply_cbr(x, p, residual=None, relu=None):
    return conv2d_affine(x, p['w'], p['scale'], p['bias'],
                         stride=p['stride'], padding=p['padding'],
                         dilation=p['dilation'],
                         relu=p['relu'] if relu is None else relu,
                         residual=residual)


def make_bottleneck(pg, inplanes, planes, stride, dilation, with_downsample):
    return dict(
        conv1=make_cbr(pg, inplanes, planes, 1, 1, 0, 1, relu=True),
        conv2=make_cbr(pg, planes, planes, 3, stride, dilation, dilation, relu=True),
        conv3=make_cbr(pg, planes, planes * 4, 1, 1, 0, 1, relu=False),
        downsample=(make_cbr(pg, inplanes, planes * 4, 1, stride, 0, 1, relu=False)
                    if with_downsample else None),
    )


def apply_bottleneck(x, p):
    identity = apply_cbr(x, p['downsample']) if p['downsample'] is not None else x
    out = apply_cbr(x, p['conv1'])
    out = apply_cbr(out, p['conv2'])
    # conv3 + BN fused with the residual add and the post-add ReLU
    out = apply_cbr(out, p['conv3'], residual=identity, relu=True)
    return out


def make_resnet_layer(pg, inplanes, planes, nblocks, stride, dilations):
    blocks = []
    for i in range(nblocks):
        d = dilations[i] if isinstance(dilations, (list, tuple)) else dilations
        s = stride if i == 0 else 1
        ds = (i == 0) and (s != 1 or inplanes != planes * 4)
        blocks.append(make_bottleneck(pg, inplanes, planes, s, d, ds))
        inplanes = planes * 4
    return blocks, inplanes


def make_deeplabv3_params(seed=0, classes=2):
    pg = ParamGen(seed)
    stem = dict(conv1=make_cbr(pg, 3, 64, 3, 2, 1, 1),
                conv2=make_cbr(pg, 64, 64, 3, 1, 1, 1),
                conv3=make_cbr(pg, 64, 128, 3, 1, 1, 1))
    layer1, c = make_resnet_layer(pg, 128, 64, 3, 1, 1)
    layer2, c = make_resnet_layer(pg, c, 128, 4, 2, 1)
    layer3, c = make_resnet_layer(pg, c, 256, 6, 1, 2)          # dilated, stride 1
    layer4, c = make_resnet_layer(pg, c, 512, 3, 1, [2, 4, 8])  # multi-grid, stride 1
    pyramids = [6, 12, 18]
    aspp = dict(
        pool_conv=make_cbr(pg, 2048, 256, 1, 1, 0, 1),
        c0=make_cbr(pg, 2048, 256, 1, 1, 0, 1),
        stages=[make_cbr(pg, 2048, 256, 3, 1, p, p) for p in pyramids],
    )
    cls = dict(
        cbr=make_cbr(pg, 256 * (len(pyramids) + 2), 256, 1, 1, 0, 1),
        w=pg.conv_weight(1, 1, 256, classes),
        b=jax.random.normal(pg.next_key(), (classes,), jnp.float32) * 0.01,
    )
    return dict(stem=stem, layer1=layer1, layer2=layer2, layer3=layer3,
                layer4=layer4, aspp=aspp, cls=cls)


# ---------------------------------------------------------------------------
# Forward pass (eval mode)
# ---------------------------------------------------------------------------
def apply_aspp(x, p):
    n, h, w, c = x.shape
    pooled = global_avg_pool(x).reshape(n, 1, 1, c)   # AdaptiveAvgPool2d(1)  (Pallas)
    hp = apply_cbr(pooled, p['pool_conv'])            # 1x1 conv-bn-relu       (Pallas)
    # bilinear interpolation of a 1x1 map back to (h, w) is a pure broadcast
    hp = jnp.broadcast_to(hp, (n, h, w, hp.shape[-1]))
    feats = [hp, apply_cbr(x, p['c0'])]
    feats += [apply_cbr(x, s) for s in p['stages']]
    return jnp.concatenate(feats, axis=-1)


def deeplabv3_forward(params, x_nchw, zoom_factor=8, classes=2):
    n, _, H, W = x_nchw.shape
    assert (H - 1) % 8 == 0 and (W - 1) % 8 == 0
    oh = (H - 1) // 8 * zoom_factor + 1
    ow = (W - 1) // 8 * zoom_factor + 1
    x = jnp.transpose(x_nchw, (0, 2, 3, 1)).astype(ACT_DTYPE)  # NCHW -> NHWC bf16

    # layer0: deep stem (3x conv-bn-relu) + maxpool
    x = apply_cbr(x, params['stem']['conv1'])
    x = apply_cbr(x, params['stem']['conv2'])
    x = apply_cbr(x, params['stem']['conv3'])
    x = max_pool_3x3_s2_p1(x)

    for blk in params['layer1']:
        x = apply_bottleneck(x, blk)
    for blk in params['layer2']:
        x = apply_bottleneck(x, blk)
    for blk in params['layer3']:
        x = apply_bottleneck(x, blk)
    x_tmp = x
    for blk in params['layer4']:
        x = apply_bottleneck(x, blk)

    x = apply_aspp(x, params['aspp'])
    x = apply_cbr(x, params['cls']['cbr'])
    # final 1x1 conv to `classes` channels: lane-sparse (classes=2) output, run
    # as plain-JAX glue in f32 instead of an underfilled MXU kernel.
    logits = (jnp.einsum('nhwc,cd->nhwd', x.astype(jnp.float32),
                         params['cls']['w'].reshape(-1, classes).astype(jnp.float32))
              + params['cls']['b'].astype(jnp.float32))
    if zoom_factor != 1:
        logits = bilinear_upsample_align_corners(logits, oh, ow)

    # TODO(synk): training branch (aux head, dropout, CrossEntropyLoss) is not
    # implemented; this reproduces the eval-mode return (x, x_tmp).
    return (jnp.transpose(logits, (0, 3, 1, 2)).astype(jnp.float32),
            jnp.transpose(x_tmp, (0, 3, 1, 2)).astype(jnp.float32))


if __name__ == "__main__":
    classes = 2
    params = make_deeplabv3_params(seed=0, classes=classes)
    x = jax.random.normal(jax.random.PRNGKey(0), (2, 3, 33, 33), jnp.float32)
    logits, feats = deeplabv3_forward(params, x, zoom_factor=8, classes=classes)
    logits = jax.block_until_ready(logits)
    feats = jax.block_until_ready(feats)
    assert logits.shape == (2, classes, 33, 33), logits.shape
    assert feats.shape == (2, 1024, 5, 5), feats.shape
    assert bool(jnp.all(jnp.isfinite(logits)))
    print("KERNEL_OK")
</pallas_src>

<mosaic_0001>
module attributes {stable_mosaic.version = 11 : i64} {
  func.func @_mm_bn_kernel_1k(%arg0: i32, %arg1: i32, %arg2: memref<200x128xbf16, #tpu.memory_space<vmem>>, %arg3: memref<128x64xbf16, #tpu.memory_space<vmem>>, %arg4: memref<1x64xf32, #tpu.memory_space<vmem>>, %arg5: memref<1x64xf32, #tpu.memory_space<vmem>>, %arg6: memref<200x64xbf16, #tpu.memory_space<vmem>>) attributes {dimension_semantics = [#tpu.dimension_semantics<parallel>, #tpu.dimension_semantics<parallel>], iteration_bounds = array<i64: 3, 1>, scalar_prefetch = 0 : i64, scratch_operands = 0 : i64, tpu.core_type = #tpu.core_type<tc>, window_params = [{transform_indices = @transform_0, window_bounds = array<i64: 200, 128>}, {transform_indices = @transform_1, window_bounds = array<i64: 128, 64>}, {transform_indices = @transform_2, window_bounds = array<i64: 1, 64>}, {transform_indices = @transform_3, window_bounds = array<i64: 1, 64>}, {transform_indices = @transform_4, window_bounds = array<i64: 200, 64>}]} {
    %c0 = arith.constant 0 : index
    %c0_0 = arith.constant 0 : index
    %0 = vector.load %arg2[%c0, %c0_0] : memref<200x128xbf16, #tpu.memory_space<vmem>>, vector<200x128xbf16>
    %c0_1 = arith.constant 0 : index
    %c0_2 = arith.constant 0 : index
    %1 = vector.load %arg3[%c0_1, %c0_2] : memref<128x64xbf16, #tpu.memory_space<vmem>>, vector<128x64xbf16>
    %cst = arith.constant dense<0.000000e+00> : vector<200x64xf32>
    %2 = tpu.matmul %0, %1, %cst {dimension_numbers = #tpu.dot_dimension_numbers<[1], [0], [0], [1], [0, 0, 1, 1], [], []>} : vector<200x128xbf16>, vector<128x64xbf16>, vector<200x64xf32> -> vector<200x64xf32>
    %c0_3 = arith.constant 0 : index
    %c0_4 = arith.constant 0 : index
    %3 = vector.load %arg4[%c0_3, %c0_4] : memref<1x64xf32, #tpu.memory_space<vmem>>, vector<1x64xf32>
    %4 = vector.broadcast %3 : vector<1x64xf32> to vector<200x64xf32>
    %5 = arith.mulf %2, %4 : vector<200x64xf32>
    %c0_5 = arith.constant 0 : index
    %c0_6 = arith.constant 0 : index
    %6 = vector.load %arg5[%c0_5, %c0_6] : memref<1x64xf32, #tpu.memory_space<vmem>>, vector<1x64xf32>
    %7 = vector.broadcast %6 : vector<1x64xf32> to vector<200x64xf32>
    %8 = arith.addf %5, %7 : vector<200x64xf32>
    %cst_7 = arith.constant 0.000000e+00 : f32
    %9 = vector.broadcast %cst_7 : f32 to vector<200x64xf32>
    %10 = arith.maximumf %8, %9 : vector<200x64xf32>
    %11 = arith.truncf %10 : vector<200x64xf32> to vector<200x64xbf16>
    %c0_8 = arith.constant 0 : index
    %c0_9 = arith.constant 0 : index
    %12 = vector.load %arg6[%c0_8, %c0_9] : memref<200x64xbf16, #tpu.memory_space<vmem>>, vector<200x64xbf16>
    tpu.vector_store %arg6[%c0_8, %c0_9], %11 {strides = array<i32>} : memref<200x64xbf16, #tpu.memory_space<vmem>>, vector<200x64xbf16>,
    return
  }
  func.func @transform_0(%arg0: i32, %arg1: i32) -> (i32, i32) {
    %c0_i32 = arith.constant 0 : i32
    %c0_i32_0 = arith.constant 0 : i32
    return %arg0, %c0_i32 : i32, i32
  }
  func.func @transform_1(%arg0: i32, %arg1: i32) -> (i32, i32) {
    %c0_i32 = arith.constant 0 : i32
    %c0_i32_0 = arith.constant 0 : i32
    return %c0_i32, %arg1 : i32, i32
  }
  func.func @transform_2(%arg0: i32, %arg1: i32) -> (i32, i32) {
    %c0_i32 = arith.constant 0 : i32
    %c0_i32_0 = arith.constant 0 : i32
    return %c0_i32, %arg1 : i32, i32
  }
  func.func @transform_3(%arg0: i32, %arg1: i32) -> (i32, i32) {
    %c0_i32 = arith.constant 0 : i32
    %c0_i32_0 = arith.constant 0 : i32
    return %c0_i32, %arg1 : i32, i32
  }
  func.func @transform_4(%arg0: i32, %arg1: i32) -> (i32, i32) {
    %c0_i32 = arith.constant 0 : i32
    return %arg0, %arg1 : i32, i32
  }
}

</mosaic_0001>

<llo_original>
// kernel: tpu_custom_call.1
$region0: #{tpu_custom_call.1}
  #allocation0 [shape = 'u32[]', space=smem, size = 0x4, offset = 0x4, fixed_abs, tag = 'smem constant byte address 0x4 - core index']
  #allocation1 [shape = 'u32[144,128]{1,0:T(1,128)}', space=vmem, size = 0x12000, scoped, tag = 'internal scratch']
  %s0 = inlined_call_operand.hbm [shape: bf16[600,128], index: 0, kind: input, shape index: {}]
  %s1 = inlined_call_operand.vmem [shape: bf16[128,64], index: 1, kind: input, shape index: {}]
  %s2 = inlined_call_operand.vmem [shape: f32[1,64], index: 2, kind: input, shape index: {}]
  %s3 = inlined_call_operand.vmem [shape: f32[1,64], index: 3, kind: input, shape index: {}]
  %s4 = inlined_call_operand.vmem [shape: bf16[600,64], index: 4, kind: output, shape index: {}]
  %s5 = sld [smem:[#allocation0]]
  $region53: #{tpu_custom_call.1} parent=0
    _
  %s7 = ssub.s32 1, %s5
  %s8 = scalar_select 0, %s7, %s5
  $region1: #{tpu_custom_call.1} parent=0
    #allocation2 [shape = 'u8[102400]{0}', space=vmem, size = 0x19000, scoped, tag = 'input window, operand 0']
    #allocation3 [shape = 's32[2]{0}', space=sflag, size = 0x8, scoped, tag = 'scoped memory for tpu_custom_call.1']
    %9 = vsyncpa [#allocation3], 0
    %s10 = scalar_lea.sflag [#allocation3], 1
    %11 = vsyncpa %s10, 0
    loop: start=0, step=1, limit=5
    $region2: #{tpu_custom_call.1} parent=1 // loop_pre_header
      _
    $region3: #{tpu_custom_call.1} parent=1 // loop_header
      %s13 = sphi 0, %s17
      %p14 = scmp.ge.s32.totalorder %s13, 5
      %s20 = sphi 0, %s32
      %s21 = sphi 0, %s28
      %s22 = sphi 0, %s20
      %s23 = sphi 0, %s21
      %s24 = sphi 0, %s22
      %s25 = sphi 0, %s23
      %s35 = sphi 0, %s37
      %s38 = sphi 0, %s35
      %s39 = sphi 0, %s38
      %s55 = sphi 0, %s39
      %s61 = sphi 0, %s63
      %s64 = sphi 0, %s61
      %s65 = sphi 0, %s64
      %s81 = sphi 0, %s65
      %s87 = sphi 0, %s89
      %s90 = sphi 0, %s87
      %s91 = sphi 0, %s90
      %s107 = sphi 0, %s91
      %s113 = sphi 0, %s115
      %s116 = sphi 0, %s113
      %s117 = sphi 0, %s116
      %s133 = sphi 0, %s117
      %s141 = sphi 0, %s143
      %s144 = sphi 0, %s141
      %s145 = sphi 0, %s144
      %s161 = sphi 0, %s145
    $region4: #{tpu_custom_call.1} parent=1 // loop_header_branch
      %16 = sbr.rel (%p14) target = $region8
    $region5: #{tpu_custom_call.1} parent=1 // loop_body
      %s18 = ssub.s32 %s13, 1
      %s19 = ssub.s32 %s13, 2
      %s26 = sadd.s32 1, %s21
      %p27 = scmp.ge.s32.totalorder %s26, 1
      %s28 = scalar_select %p27, 0, %s26
      %s29 = sadd.s32 1, %s20
      %s30 = scalar_select %p27, %s29, %s20
      %p31 = scmp.ge.s32.totalorder %s30, 3
      %s32 = scalar_select %p31, 0, %s30
      %s33 = ssub.s32 %s20, %s32
      %p34 = scmp.eq.s32.totalorder %s33, 0
      %s36 = sadd.s32 %s35, 1
      %s37 = scalar_select %p34, %s35, %s36
      %p40 = pneg %p34
      %p41 = scmp.eq.s32.totalorder %s13, 2
      %p42 = por %p40, %p41
      %p43 = scmp.ne.s32.totalorder %s35, %s38
      %p44 = scmp.eq.s32.totalorder %s13, 0
      %p45 = por %p43, %p44
      %p46 = scmp.ne.s32.totalorder %s35, %s38
      %p47 = scmp.eq.s32.totalorder %s18, 2
      %p48 = por %p46, %p47
      %p49 = scmp.ne.s32.totalorder %s38, %s39
      %p50 = scmp.eq.s32.totalorder %s18, 0
      %p51 = por %p49, %p50
      %p52 = scmp.ne.s32.totalorder %s38, %s39
      %p53 = scmp.eq.s32.totalorder %s19, 2
      %p54 = por %p52, %p53
      %p56 = scmp.ne.s32.totalorder %s39, %s55
      %p57 = scmp.eq.s32.totalorder %s19, 0
      %p58 = por %p56, %p57
      %s59 = ssub.s32 %s21, %s28
      %p60 = scmp.eq.s32.totalorder %s59, 0
      %s62 = sadd.s32 %s61, 1
      %s63 = scalar_select %p60, %s61, %s62
      %p66 = pneg %p60
      %p67 = scmp.eq.s32.totalorder %s13, 2
      %p68 = por %p66, %p67
      %p69 = scmp.ne.s32.totalorder %s61, %s64
      %p70 = scmp.eq.s32.totalorder %s13, 0
      %p71 = por %p69, %p70
      %p72 = scmp.ne.s32.totalorder %s61, %s64
      %p73 = scmp.eq.s32.totalorder %s18, 2
      %p74 = por %p72, %p73
      %p75 = scmp.ne.s32.totalorder %s64, %s65
      %p76 = scmp.eq.s32.totalorder %s18, 0
      %p77 = por %p75, %p76
      %p78 = scmp.ne.s32.totalorder %s64, %s65
      %p79 = scmp.eq.s32.totalorder %s19, 2
      %p80 = por %p78, %p79
      %p82 = scmp.ne.s32.totalorder %s65, %s81
      %p83 = scmp.eq.s32.totalorder %s19, 0
      %p84 = por %p82, %p83
      %s85 = ssub.s32 %s21, %s28
      %p86 = scmp.eq.s32.totalorder %s85, 0
      %s88 = sadd.s32 %s87, 1
      %s89 = scalar_select %p86, %s87, %s88
      %p92 = pneg %p86
      %p93 = scmp.eq.s32.totalorder %s13, 2
      %p94 = por %p92, %p93
      %p95 = scmp.ne.s32.totalorder %s87, %s90
      %p96 = scmp.eq.s32.totalorder %s13, 0
      %p97 = por %p95, %p96
      %p98 = scmp.ne.s32.totalorder %s87, %s90
      %p99 = scmp.eq.s32.totalorder %s18, 2
      %p100 = por %p98, %p99
      %p101 = scmp.ne.s32.totalorder %s90, %s91
      %p102 = scmp.eq.s32.totalorder %s18, 0
      %p103 = por %p101, %p102
      %p104 = scmp.ne.s32.totalorder %s90, %s91
      %p105 = scmp.eq.s32.totalorder %s19, 2
      %p106 = por %p104, %p105
      %p108 = scmp.ne.s32.totalorder %s91, %s107
      %p109 = scmp.eq.s32.totalorder %s19, 0
      %p110 = por %p108, %p109
      %s111 = ssub.s32 %s21, %s28
      %p112 = scmp.eq.s32.totalorder %s111, 0
      %s114 = sadd.s32 %s113, 1
      %s115 = scalar_select %p112, %s113, %s114
      %p118 = pneg %p112
      %p119 = scmp.eq.s32.totalorder %s13, 2
      %p120 = por %p118, %p119
      %p121 = scmp.ne.s32.totalorder %s113, %s116
      %p122 = scmp.eq.s32.totalorder %s13, 0
      %p123 = por %p121, %p122
      %p124 = scmp.ne.s32.totalorder %s113, %s116
      %p125 = scmp.eq.s32.totalorder %s18, 2
      %p126 = por %p124, %p125
      %p127 = scmp.ne.s32.totalorder %s116, %s117
      %p128 = scmp.eq.s32.totalorder %s18, 0
      %p129 = por %p127, %p128
      %p130 = scmp.ne.s32.totalorder %s116, %s117
      %p131 = scmp.eq.s32.totalorder %s19, 2
      %p132 = por %p130, %p131
      %p134 = scmp.ne.s32.totalorder %s117, %s133
      %p135 = scmp.eq.s32.totalorder %s19, 0
      %p136 = por %p134, %p135
      %s137 = ssub.s32 %s20, %s32
      %s138 = ssub.s32 %s21, %s28
      %s139 = sor.u32 %s137, %s138
      %p140 = scmp.eq.s32.totalorder %s139, 0
      %s142 = sadd.s32 %s141, 1
      %s143 = scalar_select %p140, %s141, %s142
      %p146 = pneg %p140
      %p147 = scmp.eq.s32.totalorder %s13, 2
      %p148 = por %p146, %p147
      %p149 = scmp.ne.s32.totalorder %s141, %s144
      %p150 = scmp.eq.s32.totalorder %s13, 0
      %p151 = por %p149, %p150
      %p152 = scmp.ne.s32.totalorder %s141, %s144
      %p153 = scmp.eq.s32.totalorder %s18, 2
      %p154 = por %p152, %p153
      %p155 = scmp.ne.s32.totalorder %s144, %s145
      %p156 = scmp.eq.s32.totalorder %s18, 0
      %p157 = por %p155, %p156
      %p158 = scmp.ne.s32.totalorder %s144, %s145
      %p159 = scmp.eq.s32.totalorder %s19, 2
      %p160 = por %p158, %p159
      %p162 = scmp.ne.s32.totalorder %s145, %s161
      %p163 = scmp.eq.s32.totalorder %s19, 0
      %p164 = por %p162, %p163
      %p165 = scmp.le.s32.totalorder 1, %s13
      %p166 = scmp.lt.s32.totalorder %s13, 4
      %p167 = pnand %p165, %p166
      %p168 = pneg %p167
      // Predicated region
      $region9: #{tpu_custom_call.1} parent=5 // pred_check
        _
      $region10: #{tpu_custom_call.1} parent=5 // pred_check_branch
        %170 = sbr.rel (%p167) target = $region12
      $region11: #{tpu_custom_call.1} parent=5 // pred_region
        %s171 = ssub.s32 %s13, 1
        // Predicated region
        $region13: #{tpu_custom_call.1} parent=11 // pred_check
          %p172 = pneg %p77
        $region14: #{tpu_custom_call.1} parent=11 // pred_check_branch
          %174 = sbr.rel (%p172) target = $region16
        $region15: #{tpu_custom_call.1} parent=11 // pred_region
          %p175 = scmp.lt.s32.totalorder %s23, 0
          %s176 = scalar_select %p175, %s23, 0
          %s177 = smul.addr %s176, 4
          %s178 = scalar_lea.vmem %s1, %s177
        $region16: #{tpu_custom_call.1} parent=11 // pred_fallthru
          _
        // Predicated region
        $region17: #{tpu_custom_call.1} parent=11 // pred_check
          %p179 = pneg %p103
        $region18: #{tpu_custom_call.1} parent=11 // pred_check_branch
          %181 = sbr.rel (%p179) target = $region20
        $region19: #{tpu_custom_call.1} parent=11 // pred_region
          %p182 = scmp.lt.s32.totalorder %s23, 0
          %s183 = scalar_select %p182, %s23, 0
          %s184 = scalar_lea.vmem %s2, %s183
        $region20: #{tpu_custom_call.1} parent=11 // pred_fallthru
          _
        // Predicated region
        $region21: #{tpu_custom_call.1} parent=11 // pred_check
          %p185 = pneg %p129
        $region22: #{tpu_custom_call.1} parent=11 // pred_check_branch
          %187 = sbr.rel (%p185) target = $region24
        $region23: #{tpu_custom_call.1} parent=11 // pred_region
          %p188 = scmp.lt.s32.totalorder %s23, 0
          %s189 = scalar_select %p188, %s23, 0
          %s190 = scalar_lea.vmem %s3, %s189
        $region24: #{tpu_custom_call.1} parent=11 // pred_fallthru
          _
      $region12: #{tpu_custom_call.1} parent=5 // pred_fallthru
        _
      %p191 = scmp.lt.s32.totalorder %s13, 3
      // Predicated region
      $region25: #{tpu_custom_call.1} parent=5 // pred_check
        %p192 = pneg %p191
      $region26: #{tpu_custom_call.1} parent=5 // pred_check_branch
        %194 = sbr.rel (%p192) target = $region28
      $region27: #{tpu_custom_call.1} parent=5 // pred_region
        // Predicated region
        $region29: #{tpu_custom_call.1} parent=27 // pred_check
          %p195 = pneg %p45
        $region30: #{tpu_custom_call.1} parent=27 // pred_check_branch
          %197 = sbr.rel (%p195) target = $region32
        $region31: #{tpu_custom_call.1} parent=27 // pred_region
          %s198 = sand.u32 %s35, 1
          %s199 = scalar_lea.sflag [#allocation3], %s198
          %s200 = sand.u32 %s35, 1
          %s201 = smul.addr %s200, 100
          %s202 = scalar_lea.vmem [#allocation2], %s201
          %s203 = smul.u32 25, %s20
          %s205 = ssub.s32 1600, 1600
          %206 = vsyncadd %s199, %s205
          %s207 = smul.addr %s203, 64
          %s208 = scalar_lea.hbm %s0, %s207
          %s209 = sshll.u32 %s202, 4
          %s210 = int_to_ptr.vmem [resolvable:$true] %s209
          %215 = dma.hbm_to_vmem [thread:$0]  %s208, 1600, %s210, %s199, 64, 64, 4
        $region32: #{tpu_custom_call.1} parent=27 // pred_fallthru
          _
      $region28: #{tpu_custom_call.1} parent=5 // pred_fallthru
        _
      %p216 = scmp.le.s32.totalorder 1, %s13
      %p217 = scmp.lt.s32.totalorder %s13, 4
      %p218 = pnand %p216, %p217
      %p219 = pneg %p218
      // Predicated region
      $region33: #{tpu_custom_call.1} parent=5 // pred_check
        _
      $region34: #{tpu_custom_call.1} parent=5 // pred_check_branch
        %221 = sbr.rel (%p218) target = $region36
      $region35: #{tpu_custom_call.1} parent=5 // pred_region
        %s222 = ssub.s32 %s13, 1
        %s223 = sand.u32 %s38, 1
        %s224 = scalar_lea.sflag [#allocation3], %s223
        %s225 = sand.u32 %s38, 1
        %s226 = smul.addr %s225, 100
        %s227 = scalar_lea.vmem [#allocation2], %s226
        // Predicated region
        $region37: #{tpu_custom_call.1} parent=35 // pred_check
          %p228 = pneg %p51
        $region38: #{tpu_custom_call.1} parent=35 // pred_check_branch
          %230 = sbr.rel (%p228) target = $region40
        $region39: #{tpu_custom_call.1} parent=35 // pred_region
          %231 = dma.done %s224, 1600
        $region40: #{tpu_custom_call.1} parent=35 // pred_fallthru
          _
        %s232 = sand.u32 %s38, 1
        %s233 = scalar_lea.sflag [#allocation3], %s232
        %s234 = sand.u32 %s38, 1
        %s235 = smul.addr %s234, 100
        %s236 = scalar_lea.vmem [#allocation2], %s235
        %p237 = pneg %p51
        %p238 = pneg %p48
        %p239 = scmp.lt.s32.totalorder %s23, 0
        %s240 = scalar_select %p239, %s23, 0
        %s241 = smul.addr %s240, 4
        %s242 = scalar_lea.vmem %s1, %s241
        %p243 = pneg %p77
        %p244 = pneg %p74
        %p245 = scmp.lt.s32.totalorder %s23, 0
        %s246 = scalar_select %p245, %s23, 0
        %s247 = scalar_lea.vmem %s2, %s246
        %p248 = pneg %p103
        %p249 = pneg %p100
        %p250 = scmp.lt.s32.totalorder %s23, 0
        %s251 = scalar_select %p250, %s23, 0
        %s252 = scalar_lea.vmem %s3, %s251
        %p253 = pneg %p129
        %p254 = pneg %p126
        %p255 = pneg %p157
        %p256 = pneg %p154
        %s257 = smul.u32 25, %s22
        %p258 = scmp.lt.s32.totalorder %s257, 74
        %s259 = scalar_select %p258, %s257, 74
        %p260 = scmp.lt.s32.totalorder %s23, 0
        %s261 = scalar_select %p260, %s23, 0
        %s262 = sadd.s32 %s261, %s259
        %s263 = smul.addr %s262, 4
        %s264 = scalar_lea.vmem %s4, %s263
        %s265 = smul.u32 25, %s22
        %p266 = scmp.lt.s32.totalorder %s23, 0
        %s267 = scalar_select %p266, %s23, 0
        %s268 = smul.addr %s267, 4
        %s269 = scalar_lea.vmem %s1, %s268
        %p270 = scmp.lt.s32.totalorder %s23, 0
        %s271 = scalar_select %p270, %s23, 0
        %s272 = scalar_lea.vmem %s2, %s271
        %p273 = scmp.lt.s32.totalorder %s23, 0
        %s274 = scalar_select %p273, %s23, 0
        %s275 = scalar_lea.vmem %s3, %s274
        %s276 = smul.u32 25, %s22
        %p277 = scmp.lt.s32.totalorder %s276, 74
        %s278 = scalar_select %p277, %s276, 74
        %p279 = scmp.lt.s32.totalorder %s23, 0
        %s280 = scalar_select %p279, %s23, 0
        %s281 = sadd.s32 %s280, %s278
        %s282 = smul.addr %s281, 4
        %s283 = scalar_lea.vmem %s4, %s282
        %s284 = smul.u32 25, %s22
        %v286 = vld [vmem:[%s227] sm:$0xf]
        %v287 = vld [vmem:[%s227 + $0x4] sm:$0xf]
        %v288 = vld [vmem:[%s227 + $0x8] sm:$0xf]
        %v289 = vld [vmem:[%s227 + $0xc] sm:$0xf]
        %v290 = vld [vmem:[%s227 + $0x10] sm:$0xf]
        %v291 = vld [vmem:[%s227 + $0x14] sm:$0xf]
        %v292 = vld [vmem:[%s227 + $0x18] sm:$0xf]
        %v293 = vld [vmem:[%s227 + $0x1c] sm:$0xf]
        %v294 = vld [vmem:[%s227 + $0x20] sm:$0xf]
        %v295 = vld [vmem:[%s227 + $0x24] sm:$0xf]
        %v296 = vld [vmem:[%s227 + $0x28] sm:$0xf]
        %v297 = vld [vmem:[%s227 + $0x2c] sm:$0xf]
        %v298 = vld [vmem:[%s227 + $0x30] sm:$0xf]
        %v299 = vld [vmem:[%s227 + $0x34] sm:$0xf]
        %v300 = vld [vmem:[%s227 + $0x38] sm:$0xf]
        %v301 = vld [vmem:[%s227 + $0x3c] sm:$0xf]
        %v302 = vld [vmem:[%s227 + $0x40] sm:$0xf]
        %v303 = vld [vmem:[%s227 + $0x44] sm:$0xf]
        %v304 = vld [vmem:[%s227 + $0x48] sm:$0xf]
        %v305 = vld [vmem:[%s227 + $0x4c] sm:$0xf]
        %v306 = vld [vmem:[%s227 + $0x50] sm:$0xf]
        %v307 = vld [vmem:[%s227 + $0x54] sm:$0xf]
        %v308 = vld [vmem:[%s227 + $0x58] sm:$0xf]
        %v309 = vld [vmem:[%s227 + $0x5c] sm:$0xf]
        %v310 = vld [vmem:[%s227 + $0x60] sm:$0xf]
        %v311 = vld [vmem:[%s269] sm:$0xf]
        %v312 = vld [vmem:[%s269 + $0x4] sm:$0xf]
        %v313 = vld [vmem:[%s269 + $0x8] sm:$0xf]
        %v314 = vld [vmem:[%s269 + $0xc] sm:$0xf]
        %v315 = vld [vmem:[%s269 + $0x10] sm:$0xf]
        %v316 = vld [vmem:[%s269 + $0x14] sm:$0xf]
        %v317 = vld [vmem:[%s269 + $0x18] sm:$0xf]
        %v318 = vld [vmem:[%s269 + $0x1c] sm:$0xf]
        %v319 = vld [vmem:[%s269 + $0x20] sm:$0xf]
        %v320 = vld [vmem:[%s269 + $0x24] sm:$0xf]
        %v321 = vld [vmem:[%s269 + $0x28] sm:$0xf]
        %v322 = vld [vmem:[%s269 + $0x2c] sm:$0xf]
        %v323 = vld [vmem:[%s269 + $0x30] sm:$0xf]
        %v324 = vld [vmem:[%s269 + $0x34] sm:$0xf]
        %v325 = vld [vmem:[%s269 + $0x38] sm:$0xf]
        %v326 = vld [vmem:[%s269 + $0x3c] sm:$0xf]
        %v352 = vunpack.c.l.b16 %v286
        %v353 = vunpack.c.l.b16 %v287
        %v354 = vunpack.c.l.b16 %v288
        %v355 = vunpack.c.l.b16 %v289
        %v356 = vunpack.c.l.b16 %v290
        %v357 = vunpack.c.l.b16 %v291
        %v358 = vunpack.c.l.b16 %v292
        %v359 = vunpack.c.l.b16 %v293
        %v360 = vunpack.c.l.b16 %v294
        %v361 = vunpack.c.l.b16 %v295
        %v362 = vunpack.c.l.b16 %v296
        %v363 = vunpack.c.l.b16 %v297
        %v364 = vunpack.c.l.b16 %v298
        %v365 = vunpack.c.l.b16 %v299
        %v366 = vunpack.c.l.b16 %v300
        %v367 = vunpack.c.l.b16 %v301
        %v368 = vunpack.c.l.b16 %v302
        %v369 = vunpack.c.l.b16 %v303
        %v370 = vunpack.c.l.b16 %v304
        %v371 = vunpack.c.l.b16 %v305
        %v372 = vunpack.c.l.b16 %v306
        %v373 = vunpack.c.l.b16 %v307
        %v374 = vunpack.c.l.b16 %v308
        %v375 = vunpack.c.l.b16 %v309
        %v376 = vunpack.c.l.b16 %v310
        %v377 = vpack.c.b16 %v353, %v352
        %v378 = vpack.c.b16 %v355, %v354
        %v379 = vpack.c.b16 %v357, %v356
        %v380 = vpack.c.b16 %v359, %v358
        %v381 = vpack.c.b16 %v361, %v360
        %v382 = vpack.c.b16 %v363, %v362
        %v383 = vpack.c.b16 %v365, %v364
        %v384 = vpack.c.b16 %v367, %v366
        %v385 = vpack.c.b16 %v369, %v368
        %v386 = vpack.c.b16 %v371, %v370
        %v387 = vpack.c.b16 %v373, %v372
        %v388 = vpack.c.b16 %v375, %v374
        %v389 = vpack.c.b16 %v376, %v376
        %v419 = vunpack.c.l.b16 %v311
        %v420 = vunpack.c.l.b16 %v312
        %v421 = vunpack.c.l.b16 %v313
        %v422 = vunpack.c.l.b16 %v314
        %v423 = vunpack.c.l.b16 %v315
        %v424 = vunpack.c.l.b16 %v316
        %v425 = vunpack.c.l.b16 %v317
        %v426 = vunpack.c.l.b16 %v318
        %v427 = vunpack.c.l.b16 %v319
        %v428 = vunpack.c.l.b16 %v320
        %v429 = vunpack.c.l.b16 %v321
        %v430 = vunpack.c.l.b16 %v322
        %v431 = vunpack.c.l.b16 %v323
        %v432 = vunpack.c.l.b16 %v324
        %v433 = vunpack.c.l.b16 %v325
        %v434 = vunpack.c.l.b16 %v326
        %v435 = vpack.c.b16 %v420, %v419
        %v436 = vpack.c.b16 %v422, %v421
        %v437 = vpack.c.b16 %v424, %v423
        %v438 = vpack.c.b16 %v426, %v425
        %v439 = vpack.c.b16 %v428, %v427
        %v440 = vpack.c.b16 %v430, %v429
        %v441 = vpack.c.b16 %v432, %v431
        %v442 = vpack.c.b16 %v434, %v433
        %451 = vmatprep.subr.bf16.mxu0 0
        %452 = vmatpush1.bf16.msra.mxu0 %v435
        %453 = vmatprep.subr.bf16.mxu0 0
        %454 = vmatpush1.bf16.msra.mxu0 %v436
        %455 = vmatprep.subr.bf16.mxu0 0
        %456 = vmatpush1.bf16.msra.mxu0 %v437
        %457 = vmatprep.subr.bf16.mxu0 0
        %458 = vmatpush1.bf16.msra.mxu0 %v438
        %459 = vmatprep.subr.bf16.mxu0 0
        %460 = vmatpush1.bf16.msra.mxu0 %v439
        %461 = vmatprep.subr.bf16.mxu0 0
        %462 = vmatpush1.bf16.msra.mxu0 %v440
        %463 = vmatprep.subr.bf16.mxu0 0
        %464 = vmatpush1.bf16.msra.mxu0 %v441
        %465 = vmatprep.subr.bf16.mxu0 0
        %466 = vmatpush1.bf16.msra.mxu0 %v442
        %467 = vmatprep.subr.bf16.mxu0 0
        %468 = vmatpush1.bf16.msra.mxu0 0
        %469 = vmatprep.subr.bf16.mxu0 0
        %470 = vmatpush1.bf16.msra.mxu0 0
        %471 = vmatprep.subr.bf16.mxu0 0
        %472 = vmatpush1.bf16.msra.mxu0 0
        %473 = vmatprep.subr.bf16.mxu0 0
        %474 = vmatpush1.bf16.msra.mxu0 0
        %475 = vmatprep.subr.bf16.mxu0 0
        %476 = vmatpush1.bf16.msra.mxu0 0
        %477 = vmatprep.subr.bf16.mxu0 0
        %478 = vmatpush1.bf16.msra.mxu0 0
        %479 = vmatprep.subr.bf16.mxu0 0
        %480 = vmatpush1.bf16.msra.mxu0 0
        %481 = vmatprep.subr.bf16.mxu0 0
        %482 = vmatpush1.bf16.msra.mxu0 0
        %483 = vmatprep.mubr.bf16.mxu0 0
        %484 = vmatmul.mubr.bf16.gmra.mrb[0].mxu0 %v377
        %v485 = vpop.f32.mrb[0].mxu0
        %v486 = vadd.f32 0.0, %v485
        %v487 = vpop.f32.mrb[0].mxu0
        %v488 = vpop.f32.mrb[0].mxu0
        %v489 = vadd.f32 0.0, %v488
        %v490 = vpop.f32.mrb[0].mxu0
        %491 = vmatprep.mubr.bf16.mxu0 0
        %492 = vmatmul.mubr.bf16.gmra.mrb[0].mxu0 %v378
        %v493 = vpop.f32.mrb[0].mxu0
        %v494 = vadd.f32 0.0, %v493
        %v495 = vpop.f32.mrb[0].mxu0
        %v496 = vpop.f32.mrb[0].mxu0
        %v497 = vadd.f32 0.0, %v496
        %v498 = vpop.f32.mrb[0].mxu0
        %499 = vmatprep.mubr.bf16.mxu0 0
        %500 = vmatmul.mubr.bf16.gmra.mrb[0].mxu0 %v379
        %v501 = vpop.f32.mrb[0].mxu0
        %v502 = vadd.f32 0.0, %v501
        %v503 = vpop.f32.mrb[0].mxu0
        %v504 = vpop.f32.mrb[0].mxu0
        %v505 = vadd.f32 0.0, %v504
        %v506 = vpop.f32.mrb[0].mxu0
        %507 = vmatprep.mubr.bf16.mxu0 0
        %508 = vmatmul.mubr.bf16.gmra.mrb[0].mxu0 %v380
        %v509 = vpop.f32.mrb[0].mxu0
        %v510 = vadd.f32 0.0, %v509
        %v511 = vpop.f32.mrb[0].mxu0
        %v512 = vpop.f32.mrb[0].mxu0
        %v513 = vadd.f32 0.0, %v512
        %v514 = vpop.f32.mrb[0].mxu0
        %515 = vmatprep.mubr.bf16.mxu0 0
        %516 = vmatmul.mubr.bf16.gmra.mrb[0].mxu0 %v381
        %v517 = vpop.f32.mrb[0].mxu0
        %v518 = vadd.f32 0.0, %v517
        %v519 = vpop.f32.mrb[0].mxu0
        %v520 = vpop.f32.mrb[0].mxu0
        %v521 = vadd.f32 0.0, %v520
        %v522 = vpop.f32.mrb[0].mxu0
        %523 = vmatprep.mubr.bf16.mxu0 0
        %524 = vmatmul.mubr.bf16.gmra.mrb[0].mxu0 %v382
        %v525 = vpop.f32.mrb[0].mxu0
        %v526 = vadd.f32 0.0, %v525
        %v527 = vpop.f32.mrb[0].mxu0
        %v528 = vpop.f32.mrb[0].mxu0
        %v529 = vadd.f32 0.0, %v528
        %v530 = vpop.f32.mrb[0].mxu0
        %531 = vmatprep.mubr.bf16.mxu0 0
        %532 = vmatmul.mubr.bf16.gmra.mrb[0].mxu0 %v383
        %v533 = vpop.f32.mrb[0].mxu0
        %v534 = vadd.f32 0.0, %v533
        %v535 = vpop.f32.mrb[0].mxu0
        %v536 = vpop.f32.mrb[0].mxu0
        %v537 = vadd.f32 0.0, %v536
        %v538 = vpop.f32.mrb[0].mxu0
        %539 = vmatprep.mubr.bf16.mxu0 0
        %540 = vmatmul.mubr.bf16.gmra.mrb[0].mxu0 %v384
        %v541 = vpop.f32.mrb[0].mxu0
        %v542 = vadd.f32 0.0, %v541
        %v543 = vpop.f32.mrb[0].mxu0
        %v544 = vpop.f32.mrb[0].mxu0
        %v545 = vadd.f32 0.0, %v544
        %v546 = vpop.f32.mrb[0].mxu0
        %547 = vmatprep.mubr.bf16.mxu0 0
        %548 = vmatmul.mubr.bf16.gmra.mrb[0].mxu0 %v385
        %v549 = vpop.f32.mrb[0].mxu0
        %v550 = vadd.f32 0.0, %v549
        %v551 = vpop.f32.mrb[0].mxu0
        %v552 = vpop.f32.mrb[0].mxu0
        %v553 = vadd.f32 0.0, %v552
        %v554 = vpop.f32.mrb[0].mxu0
        %555 = vmatprep.mubr.bf16.mxu0 0
        %556 = vmatmul.mubr.bf16.gmra.mrb[0].mxu0 %v386
        %v557 = vpop.f32.mrb[0].mxu0
        %v558 = vadd.f32 0.0, %v557
        %v559 = vpop.f32.mrb[0].mxu0
        %v560 = vpop.f32.mrb[0].mxu0
        %v561 = vadd.f32 0.0, %v560
        %v562 = vpop.f32.mrb[0].mxu0
        %563 = vmatprep.mubr.bf16.mxu0 0
        %564 = vmatmul.mubr.bf16.gmra.mrb[0].mxu0 %v387
        %v565 = vpop.f32.mrb[0].mxu0
        %v566 = vadd.f32 0.0, %v565
        %v567 = vpop.f32.mrb[0].mxu0
        %v568 = vpop.f32.mrb[0].mxu0
        %v569 = vadd.f32 0.0, %v568
        %v570 = vpop.f32.mrb[0].mxu0
        %571 = vmatprep.mubr.bf16.mxu0 0
        %572 = vmatmul.mubr.bf16.gmra.mrb[0].mxu0 %v388
        %v573 = vpop.f32.mrb[0].mxu0
        %v574 = vadd.f32 0.0, %v573
        %v575 = vpop.f32.mrb[0].mxu0
        %v576 = vpop.f32.mrb[0].mxu0
        %v577 = vadd.f32 0.0, %v576
        %v578 = vpop.f32.mrb[0].mxu0
        %579 = vmatprep.mubr.bf16.mxu0 0
        %580 = vmatmul.mubr.bf16.gmra.mrb[0].mxu0 %v389
        %v581 = vpop.f32.mrb[0].mxu0
        %v582 = vadd.f32 0.0, %v581
        %v583 = vpop.f32.mrb[0].mxu0
        %v584 = vpop.f32.mrb[0].mxu0
        %v585 = vpop.f32.mrb[0].mxu0
        %586 = vdwg.mxu0
        %v587 = vld [vmem:[%s272] sm:$0x1]
        %v589 = vlaneseq
        %v590 = vshrl.u32 %v589, 7
        %v591 = vsub.s32 0, %v590
        %v592 = vrot.slane %v587, %v591
        %v594 = vmul.f32 %v486, %v592
        %v595 = vmul.f32 %v489, %v592
        %v596 = vmul.f32 %v494, %v592
        %v597 = vmul.f32 %v497, %v592
        %v598 = vmul.f32 %v502, %v592
        %v599 = vmul.f32 %v505, %v592
        %v600 = vmul.f32 %v510, %v592
        %v601 = vmul.f32 %v513, %v592
        %v602 = vmul.f32 %v518, %v592
        %v603 = vmul.f32 %v521, %v592
        %v604 = vmul.f32 %v526, %v592
        %v605 = vmul.f32 %v529, %v592
        %v606 = vmul.f32 %v534, %v592
        %v607 = vmul.f32 %v537, %v592
        %v608 = vmul.f32 %v542, %v592
        %v609 = vmul.f32 %v545, %v592
        %v610 = vmul.f32 %v550, %v592
        %v611 = vmul.f32 %v553, %v592
        %v612 = vmul.f32 %v558, %v592
        %v613 = vmul.f32 %v561, %v592
        %v614 = vmul.f32 %v566, %v592
        %v615 = vmul.f32 %v569, %v592
        %v616 = vmul.f32 %v574, %v592
        %v617 = vmul.f32 %v577, %v592
        %v618 = vmul.f32 %v582, %v592
        %v619 = vld [vmem:[%s275] sm:$0x1]
        %v621 = vlaneseq
        %v622 = vshrl.u32 %v621, 7
        %v623 = vsub.s32 0, %v622
        %v624 = vrot.slane %v619, %v623
        %v626 = vadd.f32 %v594, %v624
        %v627 = vadd.f32 %v595, %v624
        %v628 = vadd.f32 %v596, %v624
        %v629 = vadd.f32 %v597, %v624
        %v630 = vadd.f32 %v598, %v624
        %v631 = vadd.f32 %v599, %v624
        %v632 = vadd.f32 %v600, %v624
        %v633 = vadd.f32 %v601, %v624
        %v634 = vadd.f32 %v602, %v624
        %v635 = vadd.f32 %v603, %v624
        %v636 = vadd.f32 %v604, %v624
        %v637 = vadd.f32 %v605, %v624
        %v638 = vadd.f32 %v606, %v624
        %v639 = vadd.f32 %v607, %v624
        %v640 = vadd.f32 %v608, %v624
        %v641 = vadd.f32 %v609, %v624
        %v642 = vadd.f32 %v610, %v624
        %v643 = vadd.f32 %v611, %v624
        %v644 = vadd.f32 %v612, %v624
        %v645 = vadd.f32 %v613, %v624
        %v646 = vadd.f32 %v614, %v624
        %v647 = vadd.f32 %v615, %v624
        %v648 = vadd.f32 %v616, %v624
        %v649 = vadd.f32 %v617, %v624
        %v650 = vadd.f32 %v618, %v624
        %v651 = vmax.f32 %v626, 0.0
        %v652 = vmax.f32 %v627, 0.0
        %v653 = vmax.f32 %v628, 0.0
        %v654 = vmax.f32 %v629, 0.0
        %v655 = vmax.f32 %v630, 0.0
        %v656 = vmax.f32 %v631, 0.0
        %v657 = vmax.f32 %v632, 0.0
        %v658 = vmax.f32 %v633, 0.0
        %v659 = vmax.f32 %v634, 0.0
        %v660 = vmax.f32 %v635, 0.0
        %v661 = vmax.f32 %v636, 0.0
        %v662 = vmax.f32 %v637, 0.0
        %v663 = vmax.f32 %v638, 0.0
        %v664 = vmax.f32 %v639, 0.0
        %v665 = vmax.f32 %v640, 0.0
        %v666 = vmax.f32 %v641, 0.0
        %v667 = vmax.f32 %v642, 0.0
        %v668 = vmax.f32 %v643, 0.0
        %v669 = vmax.f32 %v644, 0.0
        %v670 = vmax.f32 %v645, 0.0
        %v671 = vmax.f32 %v646, 0.0
        %v672 = vmax.f32 %v647, 0.0
        %v673 = vmax.f32 %v648, 0.0
        %v674 = vmax.f32 %v649, 0.0
        %v675 = vmax.f32 %v650, 0.0
        %v676 = vpack.c.bf16 %v652, %v651
        %v677 = vpack.c.bf16 %v654, %v653
        %v678 = vpack.c.bf16 %v656, %v655
        %v679 = vpack.c.bf16 %v658, %v657
        %v680 = vpack.c.bf16 %v660, %v659
        %v681 = vpack.c.bf16 %v662, %v661
        %v682 = vpack.c.bf16 %v664, %v663
        %v683 = vpack.c.bf16 %v666, %v665
        %v684 = vpack.c.bf16 %v668, %v667
        %v685 = vpack.c.bf16 %v670, %v669
        %v686 = vpack.c.bf16 %v672, %v671
        %v687 = vpack.c.bf16 %v674, %v673
        %v688 = vpack.c.bf16 %v675, %v675
        %v702 = vunpack.c.l.b16 %v676
        %v703 = vunpack.c.h.b16 %v676
        %v704 = vunpack.c.l.b16 %v677
        %v705 = vunpack.c.h.b16 %v677
        %v706 = vunpack.c.l.b16 %v678
        %v707 = vunpack.c.h.b16 %v678
        %v708 = vunpack.c.l.b16 %v679
        %v709 = vunpack.c.h.b16 %v679
        %v710 = vunpack.c.l.b16 %v680
        %v711 = vunpack.c.h.b16 %v680
        %v712 = vunpack.c.l.b16 %v681
        %v713 = vunpack.c.h.b16 %v681
        %v714 = vunpack.c.l.b16 %v682
        %v715 = vunpack.c.h.b16 %v682
        %v716 = vunpack.c.l.b16 %v683
        %v717 = vunpack.c.h.b16 %v683
        %v718 = vunpack.c.l.b16 %v684
        %v719 = vunpack.c.h.b16 %v684
        %v720 = vunpack.c.l.b16 %v685
        %v721 = vunpack.c.h.b16 %v685
        %v722 = vunpack.c.l.b16 %v686
        %v723 = vunpack.c.h.b16 %v686
        %v724 = vunpack.c.l.b16 %v687
        %v725 = vunpack.c.h.b16 %v687
        %v726 = vunpack.c.l.b16 %v688
        %v727 = vpack.c.b16 %v702, %v702
        %v728 = vpack.c.b16 %v703, %v703
        %v729 = vpack.c.b16 %v704, %v704
        %v730 = vpack.c.b16 %v705, %v705
        %v731 = vpack.c.b16 %v706, %v706
        %v732 = vpack.c.b16 %v707, %v707
        %v733 = vpack.c.b16 %v708, %v708
        %v734 = vpack.c.b16 %v709, %v709
        %v735 = vpack.c.b16 %v710, %v710
        %v736 = vpack.c.b16 %v711, %v711
        %v737 = vpack.c.b16 %v712, %v712
        %v738 = vpack.c.b16 %v713, %v713
        %v739 = vpack.c.b16 %v714, %v714
        %v740 = vpack.c.b16 %v715, %v715
        %v741 = vpack.c.b16 %v716, %v716
        %v742 = vpack.c.b16 %v717, %v717
        %v743 = vpack.c.b16 %v718, %v718
        %v744 = vpack.c.b16 %v719, %v719
        %v745 = vpack.c.b16 %v720, %v720
        %v746 = vpack.c.b16 %v721, %v721
        %v747 = vpack.c.b16 %v722, %v722
        %v748 = vpack.c.b16 %v723, %v723
        %v749 = vpack.c.b16 %v724, %v724
        %v750 = vpack.c.b16 %v725, %v725
        %v751 = vpack.c.b16 %v726, %v726
        %vm777 = vcmask 519168
        %778 = vst.msk [vmem:[%s283] sm:$0xf] %vm777, %v727
        %779 = vst.msk [vmem:[%s283 + $0x4] sm:$0xf] %vm777, %v728
        %780 = vst.msk [vmem:[%s283 + $0x8] sm:$0xf] %vm777, %v729
        %781 = vst.msk [vmem:[%s283 + $0xc] sm:$0xf] %vm777, %v730
        %782 = vst.msk [vmem:[%s283 + $0x10] sm:$0xf] %vm777, %v731
        %783 = vst.msk [vmem:[%s283 + $0x14] sm:$0xf] %vm777, %v732
        %784 = vst.msk [vmem:[%s283 + $0x18] sm:$0xf] %vm777, %v733
        %785 = vst.msk [vmem:[%s283 + $0x1c] sm:$0xf] %vm777, %v734
        %786 = vst.msk [vmem:[%s283 + $0x20] sm:$0xf] %vm777, %v735
        %787 = vst.msk [vmem:[%s283 + $0x24] sm:$0xf] %vm777, %v736
        %788 = vst.msk [vmem:[%s283 + $0x28] sm:$0xf] %vm777, %v737
        %789 = vst.msk [vmem:[%s283 + $0x2c] sm:$0xf] %vm777, %v738
        %790 = vst.msk [vmem:[%s283 + $0x30] sm:$0xf] %vm777, %v739
        %791 = vst.msk [vmem:[%s283 + $0x34] sm:$0xf] %vm777, %v740
        %792 = vst.msk [vmem:[%s283 + $0x38] sm:$0xf] %vm777, %v741
        %793 = vst.msk [vmem:[%s283 + $0x3c] sm:$0xf] %vm777, %v742
        %794 = vst.msk [vmem:[%s283 + $0x40] sm:$0xf] %vm777, %v743
        %795 = vst.msk [vmem:[%s283 + $0x44] sm:$0xf] %vm777, %v744
        %796 = vst.msk [vmem:[%s283 + $0x48] sm:$0xf] %vm777, %v745
        %797 = vst.msk [vmem:[%s283 + $0x4c] sm:$0xf] %vm777, %v746
        %798 = vst.msk [vmem:[%s283 + $0x50] sm:$0xf] %vm777, %v747
        %799 = vst.msk [vmem:[%s283 + $0x54] sm:$0xf] %vm777, %v748
        %800 = vst.msk [vmem:[%s283 + $0x58] sm:$0xf] %vm777, %v749
        %801 = vst.msk [vmem:[%s283 + $0x5c] sm:$0xf] %vm777, %v750
        %802 = vst.msk [vmem:[%s283 + $0x60] sm:$0xf] %vm777, %v751
        %s803 = smul.u32 25, %s22
        %p804 = scmp.lt.s32.totalorder %s803, 74
        %s805 = scalar_select %p804, %s803, 74
        %p806 = scmp.lt.s32.totalorder %s23, 0
        %s807 = scalar_select %p806, %s23, 0
        %s808 = sadd.s32 %s807, %s805
        %s809 = smul.addr %s808, 4
        %s810 = scalar_lea.vmem %s4, %s809
        // Predicated region
        $region41: #{tpu_custom_call.1} parent=35 // pred_check
          %p811 = pneg %p154
        $region42: #{tpu_custom_call.1} parent=35 // pred_check_branch
          %813 = sbr.rel (%p811) target = $region44
        $region43: #{tpu_custom_call.1} parent=35 // pred_region
          %s814 = smul.u32 25, %s22
        $region44: #{tpu_custom_call.1} parent=35 // pred_fallthru
          _
      $region36: #{tpu_custom_call.1} parent=5 // pred_fallthru
        _
      %p815 = scmp.le.s32.totalorder 2, %s13
      // Predicated region
      $region45: #{tpu_custom_call.1} parent=5 // pred_check
        %p816 = pneg %p815
      $region46: #{tpu_custom_call.1} parent=5 // pred_check_branch
        %818 = sbr.rel (%p816) target = $region48
      $region47: #{tpu_custom_call.1} parent=5 // pred_region
        %s819 = ssub.s32 %s13, 2
        // Predicated region
        $region49: #{tpu_custom_call.1} parent=47 // pred_check
          %p820 = pneg %p160
        $region50: #{tpu_custom_call.1} parent=47 // pred_check_branch
          %822 = sbr.rel (%p820) target = $region52
        $region51: #{tpu_custom_call.1} parent=47 // pred_region
          %s823 = smul.u32 25, %s24
          %p824 = scmp.lt.s32.totalorder %s823, 74
          %s825 = scalar_select %p824, %s823, 74
          %p826 = scmp.lt.s32.totalorder %s25, 0
          %s827 = scalar_select %p826, %s25, 0
          %s828 = sadd.s32 %s827, %s825
          %s829 = smul.addr %s828, 4
          %s830 = scalar_lea.vmem %s4, %s829
        $region52: #{tpu_custom_call.1} parent=47 // pred_fallthru
          _
      $region48: #{tpu_custom_call.1} parent=5 // pred_fallthru
        _
    $region6: #{tpu_custom_call.1} parent=1 // loop_footer
      %s17 = sadd.s32 1, %s13
    $region7: #{tpu_custom_call.1} parent=1 // loop_footer_branch
      %12 = sbr.rel target = $region3
    $region8: #{tpu_custom_call.1} parent=1 // loop_exit
      _
    %831 = vsyncpa [#allocation3], 1
    %s832 = scalar_lea.sflag [#allocation3], 1
    %833 = vsyncpa %s832, 1

</llo_original>
